<compile_context>
chip_gen: v7x
topology: tpu7x:2x2x1
jax: 0.10.0
libtpu: 0.0.40
codegen_flags: <defaults>
</compile_context>

<pallas_src>
import jax
import jax.numpy as jnp
from jax.experimental import pallas as pl
from jax.experimental.pallas import tpu as pltpu


_MAX_BLOCK_BYTES = 4 * 1024 * 1024    # per-array block cap (2 in + 2 out bufs = 16 MiB)
_VMEM_LIMIT_BYTES = 32 * 1024 * 1024  # scoped-VMEM budget, safe on v5e / v6e / v7x


def _copy_kernel(x_ref, o_ref):
    # BaseNetwork.forward performs no computation; pass the block through.
    o_ref[...] = x_ref[...]


def _pick_leading_block(lead, row_bytes):
    """Largest divisor of `lead` whose block fits the byte cap, preferring a
    grid of >= 2 steps (so v7x's two TensorCores both stream DMA)."""
    if row_bytes > _MAX_BLOCK_BYTES:
        return None
    max_rows = max(1, _MAX_BLOCK_BYTES // row_bytes)
    best = None
    for b in range(1, min(lead, max_rows) + 1):
        if lead % b != 0:
            continue
        if lead >= 2 and (lead // b) < 2:
            continue  # keep >= 2 grid steps when possible (megacore on v7x)
        best = b
    return best


def _pallas_identity_copy(inputs):
    """Debug-only Pallas pass-through copy of `inputs` (bit-exact).

    Tiles the original N-D array directly along its leading axis; no host-side
    reshape, so no hidden relayout copies bracket the kernel.
    """
    shape = inputs.shape
    ndim = len(shape)
    if ndim < 2:
        # Scalars / 1-D vectors: kernel overhead dwarfs the copy; identity is exact.
        return inputs

    lead = shape[0]
    rest = shape[1:]
    row_bytes = inputs.dtype.itemsize
    for s in rest:
        row_bytes *= s
    if row_bytes == 0 or lead == 0:
        return inputs

    block_rows = _pick_leading_block(lead, row_bytes)
    if block_rows is None:
        # A single leading slice exceeds the per-block VMEM cap; identity is
        # exact and faster than any awkward tiling for this debug path.
        return inputs

    block_shape = (block_rows,) + rest            # trailing dims at full extent
    index_map = lambda i: (i,) + (0,) * (ndim - 1)
    grid = (lead // block_rows,)

    return pl.pallas_call(
        _copy_kernel,
        out_shape=jax.ShapeDtypeStruct(shape, inputs.dtype),
        grid=grid,
        in_specs=[pl.BlockSpec(block_shape, index_map)],
        out_specs=pl.BlockSpec(block_shape, index_map),
        compiler_params=pltpu.CompilerParams(
            dimension_semantics=("parallel",),
            vmem_limit_bytes=_VMEM_LIMIT_BYTES,
        ),
    )(inputs)


def base_network_forward(inputs, mask=None, force_copy=False):
    """Pallas implementation of BaseNetwork.forward.

    The reference forward() is a no-op, so the default (and fastest) path
    returns `inputs` unchanged — zero HBM traffic, zero launch overhead.
    `mask` is accepted for signature parity and is unused, as in the reference.
    Set `force_copy=True` to route through the Pallas streaming-copy kernel
    (debug / benchmarking only).
    """
    del mask
    if not force_copy:
        return inputs
    return _pallas_identity_copy(inputs)


if __name__ == "__main__":
    key = jax.random.PRNGKey(0)
    # Small NCDHW "brain volume" consistent with a 3D ResNet input:
    # batch=2, channels=4, depth=8, height=16, width=16.
    x = jax.random.normal(key, (2, 4, 8, 16, 16), dtype=jnp.float32)

    # Default path: pure identity (the reference forward() does nothing).
    y = base_network_forward(x)
    y = jax.block_until_ready(y)
    assert y.shape == x.shape and y.dtype == x.dtype
    assert bool(jnp.all(y == x))

    # Debug path: exercise the Pallas copy kernel once and verify bit-exactness.
    y_copy = base_network_forward(x, force_copy=True)
    y_copy = jax.block_until_ready(y_copy)
    assert y_copy.shape == x.shape and y_copy.dtype == x.dtype
    assert bool(jnp.all(y_copy == x))

    print("KERNEL_OK")
</pallas_src>

<mosaic_0001>
module attributes {stable_mosaic.version = 11 : i64} {
  func.func @_copy_kernel(%arg0: i32, %arg1: memref<1x4x8x16x16xf32, #tpu.memory_space<vmem>>, %arg2: memref<1x4x8x16x16xf32, #tpu.memory_space<vmem>>) attributes {dimension_semantics = [#tpu.dimension_semantics<parallel>], iteration_bounds = array<i64: 2>, scalar_prefetch = 0 : i64, scratch_operands = 0 : i64, tpu.core_type = #tpu.core_type<tc>, window_params = [{transform_indices = @transform_0, window_bounds = array<i64: 1, 4, 8, 16, 16>}, {transform_indices = @transform_1, window_bounds = array<i64: 1, 4, 8, 16, 16>}]} {
    %c0 = arith.constant 0 : index
    %c0_0 = arith.constant 0 : index
    %c0_1 = arith.constant 0 : index
    %c0_2 = arith.constant 0 : index
    %c0_3 = arith.constant 0 : index
    %0 = vector.load %arg1[%c0, %c0_0, %c0_1, %c0_2, %c0_3] : memref<1x4x8x16x16xf32, #tpu.memory_space<vmem>>, vector<1x4x8x16x16xf32>
    %c0_4 = arith.constant 0 : index
    %c0_5 = arith.constant 0 : index
    %c0_6 = arith.constant 0 : index
    %c0_7 = arith.constant 0 : index
    %c0_8 = arith.constant 0 : index
    %1 = vector.load %arg2[%c0_4, %c0_5, %c0_6, %c0_7, %c0_8] : memref<1x4x8x16x16xf32, #tpu.memory_space<vmem>>, vector<1x4x8x16x16xf32>
    tpu.vector_store %arg2[%c0_4, %c0_5, %c0_6, %c0_7, %c0_8], %0 {strides = array<i32>} : memref<1x4x8x16x16xf32, #tpu.memory_space<vmem>>, vector<1x4x8x16x16xf32>,
    return
  }
  func.func @transform_0(%arg0: i32) -> (i32, i32, i32, i32, i32) {
    %c0_i32 = arith.constant 0 : i32
    %c0_i32_0 = arith.constant 0 : i32
    %c0_i32_1 = arith.constant 0 : i32
    %c0_i32_2 = arith.constant 0 : i32
    %c0_i32_3 = arith.constant 0 : i32
    return %arg0, %c0_i32, %c0_i32_0, %c0_i32_1, %c0_i32_2 : i32, i32, i32, i32, i32
  }
  func.func @transform_1(%arg0: i32) -> (i32, i32, i32, i32, i32) {
    %c0_i32 = arith.constant 0 : i32
    %c0_i32_0 = arith.constant 0 : i32
    %c0_i32_1 = arith.constant 0 : i32
    %c0_i32_2 = arith.constant 0 : i32
    %c0_i32_3 = arith.constant 0 : i32
    return %arg0, %c0_i32, %c0_i32_0, %c0_i32_1, %c0_i32_2 : i32, i32, i32, i32, i32
  }
}

</mosaic_0001>

<llo_original>
// kernel: tpu_custom_call.1
$region0: #{tpu_custom_call.1}
  #allocation0 [shape = 'u32[]', space=smem, size = 0x4, offset = 0x4, fixed_abs, tag = 'smem constant byte address 0x4 - core index']
  #allocation1 [shape = 'u32[144,128]{1,0:T(1,128)}', space=vmem, size = 0x12000, scoped, tag = 'internal scratch']
  %s0 = inlined_call_operand.hbm [shape: f32[2,4,8,16,16], index: 0, kind: input, shape index: {}]
  %s1 = inlined_call_operand.hbm [shape: f32[2,4,8,16,16], index: 1, kind: output, shape index: {}]
  %s2 = sld [smem:[#allocation0]]
  $region41: #{tpu_custom_call.1} parent=0
    _
  %s4 = ssub.s32 1, %s2
  %s5 = scalar_select 0, %s4, %s2
  $region1: #{tpu_custom_call.1} parent=0
    #allocation2 [shape = 'u8[524288]{0}', space=vmem, size = 0x80000, scoped, tag = 'input window, operand 0']
    #allocation3 [shape = 's32[2]{0}', space=sflag, size = 0x8, scoped, tag = 'scoped memory for tpu_custom_call.1']
    #allocation4 [shape = 's32[2]{0}', space=sflag, size = 0x8, scoped, tag = 'scoped memory for tpu_custom_call.1']
    #allocation5 [shape = 'u8[524288]{0}', space=vmem, size = 0x80000, scoped, tag = 'output window, operand 0']
    %6 = vsyncpa [#allocation3], 0
    %s7 = scalar_lea.sflag [#allocation3], 1
    %8 = vsyncpa %s7, 0
    %9 = vsyncpa [#allocation4], 0
    %s10 = scalar_lea.sflag [#allocation4], 1
    %11 = vsyncpa %s10, 0
    loop: start=0, step=1, limit=4
    $region2: #{tpu_custom_call.1} parent=1 // loop_pre_header
      _
    $region3: #{tpu_custom_call.1} parent=1 // loop_header
      %s13 = sphi 0, %s17
      %p14 = scmp.ge.s32.totalorder %s13, 4
      %s23 = sphi 0, %s25
      %s26 = sphi 0, %s23
      %s27 = sphi 0, %s26
      %s43 = sphi 0, %s27
      %s49 = sphi 0, %s51
      %s52 = sphi 0, %s49
      %s53 = sphi 0, %s52
      %s69 = sphi 0, %s53
    $region4: #{tpu_custom_call.1} parent=1 // loop_header_branch
      %16 = sbr.rel (%p14) target = $region8
    $region5: #{tpu_custom_call.1} parent=1 // loop_body
      %s18 = ssub.s32 %s13, 1
      %s19 = ssub.s32 %s13, 2
      %s20 = sadd.s32 %s13, 1
      %s21 = ssub.s32 %s13, %s20
      %p22 = scmp.eq.s32.totalorder %s21, 0
      %s24 = sadd.s32 %s23, 1
      %s25 = scalar_select %p22, %s23, %s24
      %p28 = pneg %p22
      %p29 = scmp.eq.s32.totalorder %s13, 1
      %p30 = por %p28, %p29
      %p31 = scmp.ne.s32.totalorder %s23, %s26
      %p32 = scmp.eq.s32.totalorder %s13, 0
      %p33 = por %p31, %p32
      %p34 = scmp.ne.s32.totalorder %s23, %s26
      %p35 = scmp.eq.s32.totalorder %s18, 1
      %p36 = por %p34, %p35
      %p37 = scmp.ne.s32.totalorder %s26, %s27
      %p38 = scmp.eq.s32.totalorder %s18, 0
      %p39 = por %p37, %p38
      %p40 = scmp.ne.s32.totalorder %s26, %s27
      %p41 = scmp.eq.s32.totalorder %s19, 1
      %p42 = por %p40, %p41
      %p44 = scmp.ne.s32.totalorder %s27, %s43
      %p45 = scmp.eq.s32.totalorder %s19, 0
      %p46 = por %p44, %p45
      %s47 = ssub.s32 %s13, %s20
      %p48 = scmp.eq.s32.totalorder %s47, 0
      %s50 = sadd.s32 %s49, 1
      %s51 = scalar_select %p48, %s49, %s50
      %p54 = pneg %p48
      %p55 = scmp.eq.s32.totalorder %s13, 1
      %p56 = por %p54, %p55
      %p57 = scmp.ne.s32.totalorder %s49, %s52
      %p58 = scmp.eq.s32.totalorder %s13, 0
      %p59 = por %p57, %p58
      %p60 = scmp.ne.s32.totalorder %s49, %s52
      %p61 = scmp.eq.s32.totalorder %s18, 1
      %p62 = por %p60, %p61
      %p63 = scmp.ne.s32.totalorder %s52, %s53
      %p64 = scmp.eq.s32.totalorder %s18, 0
      %p65 = por %p63, %p64
      %p66 = scmp.ne.s32.totalorder %s52, %s53
      %p67 = scmp.eq.s32.totalorder %s19, 1
      %p68 = por %p66, %p67
      %p70 = scmp.ne.s32.totalorder %s53, %s69
      %p71 = scmp.eq.s32.totalorder %s19, 0
      %p72 = por %p70, %p71
      %p73 = scmp.le.s32.totalorder 1, %s13
      %p74 = scmp.lt.s32.totalorder %s13, 3
      %p75 = pnand %p73, %p74
      %p76 = pneg %p75
      // Predicated region
      $region9: #{tpu_custom_call.1} parent=5 // pred_check
        _
      $region10: #{tpu_custom_call.1} parent=5 // pred_check_branch
        %78 = sbr.rel (%p75) target = $region12
      $region11: #{tpu_custom_call.1} parent=5 // pred_region
        %s79 = ssub.s32 %s13, 1
      $region12: #{tpu_custom_call.1} parent=5 // pred_fallthru
        _
      %p80 = scmp.lt.s32.totalorder %s13, 2
      // Predicated region
      $region13: #{tpu_custom_call.1} parent=5 // pred_check
        %p81 = pneg %p80
      $region14: #{tpu_custom_call.1} parent=5 // pred_check_branch
        %83 = sbr.rel (%p81) target = $region16
      $region15: #{tpu_custom_call.1} parent=5 // pred_region
        // Predicated region
        $region17: #{tpu_custom_call.1} parent=15 // pred_check
          %p84 = pneg %p33
        $region18: #{tpu_custom_call.1} parent=15 // pred_check_branch
          %86 = sbr.rel (%p84) target = $region20
        $region19: #{tpu_custom_call.1} parent=15 // pred_region
          %s87 = sand.u32 %s23, 1
          %s88 = scalar_lea.sflag [#allocation3], %s87
          %s89 = sand.u32 %s23, 1
          %s90 = smul.addr %s89, 512
          %s91 = scalar_lea.vmem [#allocation2], %s90
          %s93 = ssub.s32 8192, 8192
          %94 = vsyncadd %s88, %s93
          %s95 = smul.addr %s13, 64
          %s96 = smul.addr %s95, 128
          %s97 = scalar_lea.hbm %s0, %s96
          %s98 = sshll.u32 %s91, 4
          %s99 = int_to_ptr.vmem [resolvable:$true] %s98
          %104 = dma.hbm_to_vmem [thread:$0]  %s97, 8192, %s99, %s88, 128, 128, 8
        $region20: #{tpu_custom_call.1} parent=15 // pred_fallthru
          _
      $region16: #{tpu_custom_call.1} parent=5 // pred_fallthru
        _
      %p105 = scmp.le.s32.totalorder 1, %s13
      %p106 = scmp.lt.s32.totalorder %s13, 3
      %p107 = pnand %p105, %p106
      %p108 = pneg %p107
      // Predicated region
      $region21: #{tpu_custom_call.1} parent=5 // pred_check
        _
      $region22: #{tpu_custom_call.1} parent=5 // pred_check_branch
        %110 = sbr.rel (%p107) target = $region24
      $region23: #{tpu_custom_call.1} parent=5 // pred_region
        %s111 = ssub.s32 %s13, 1
        %s112 = sand.u32 %s26, 1
        %s113 = scalar_lea.sflag [#allocation3], %s112
        %s114 = sand.u32 %s26, 1
        %s115 = smul.addr %s114, 512
        %s116 = scalar_lea.vmem [#allocation2], %s115
        // Predicated region
        $region25: #{tpu_custom_call.1} parent=23 // pred_check
          %p117 = pneg %p39
        $region26: #{tpu_custom_call.1} parent=23 // pred_check_branch
          %119 = sbr.rel (%p117) target = $region28
        $region27: #{tpu_custom_call.1} parent=23 // pred_region
          %120 = dma.done %s113, 8192
        $region28: #{tpu_custom_call.1} parent=23 // pred_fallthru
          _
        %s121 = sand.u32 %s26, 1
        %s122 = scalar_lea.sflag [#allocation3], %s121
        %s123 = sand.u32 %s26, 1
        %s124 = smul.addr %s123, 512
        %s125 = scalar_lea.vmem [#allocation2], %s124
        %p126 = pneg %p39
        %p127 = pneg %p36
        %p128 = pneg %p65
        %p129 = pneg %p62
        %s130 = sand.u32 %s52, 1
        %s131 = scalar_lea.sflag [#allocation4], %s130
        %s132 = sand.u32 %s52, 1
        %s133 = smul.addr %s132, 512
        %s134 = scalar_lea.vmem [#allocation5], %s133
        %v135 = vld [vmem:[%s116] sm:$0xff]
        %v136 = vld [vmem:[%s116 + $0x8] sm:$0xff]
        %v137 = vld [vmem:[%s116 + $0x10] sm:$0xff]
        %v138 = vld [vmem:[%s116 + $0x18] sm:$0xff]
        %v139 = vld [vmem:[%s116 + $0x20] sm:$0xff]
        %v140 = vld [vmem:[%s116 + $0x28] sm:$0xff]
        %v141 = vld [vmem:[%s116 + $0x30] sm:$0xff]
        %v142 = vld [vmem:[%s116 + $0x38] sm:$0xff]
        %v143 = vld [vmem:[%s116 + $0x40] sm:$0xff]
        %v144 = vld [vmem:[%s116 + $0x48] sm:$0xff]
        %v145 = vld [vmem:[%s116 + $0x50] sm:$0xff]
        %v146 = vld [vmem:[%s116 + $0x58] sm:$0xff]
        %v147 = vld [vmem:[%s116 + $0x60] sm:$0xff]
        %v148 = vld [vmem:[%s116 + $0x68] sm:$0xff]
        %v149 = vld [vmem:[%s116 + $0x70] sm:$0xff]
        %v150 = vld [vmem:[%s116 + $0x78] sm:$0xff]
        %v151 = vld [vmem:[%s116 + $0x80] sm:$0xff]
        %v152 = vld [vmem:[%s116 + $0x88] sm:$0xff]
        %v153 = vld [vmem:[%s116 + $0x90] sm:$0xff]
        %v154 = vld [vmem:[%s116 + $0x98] sm:$0xff]
        %v155 = vld [vmem:[%s116 + $0xa0] sm:$0xff]
        %v156 = vld [vmem:[%s116 + $0xa8] sm:$0xff]
        %v157 = vld [vmem:[%s116 + $0xb0] sm:$0xff]
        %v158 = vld [vmem:[%s116 + $0xb8] sm:$0xff]
        %v159 = vld [vmem:[%s116 + $0xc0] sm:$0xff]
        %v160 = vld [vmem:[%s116 + $0xc8] sm:$0xff]
        %v161 = vld [vmem:[%s116 + $0xd0] sm:$0xff]
        %v162 = vld [vmem:[%s116 + $0xd8] sm:$0xff]
        %v163 = vld [vmem:[%s116 + $0xe0] sm:$0xff]
        %v164 = vld [vmem:[%s116 + $0xe8] sm:$0xff]
        %v165 = vld [vmem:[%s116 + $0xf0] sm:$0xff]
        %v166 = vld [vmem:[%s116 + $0xf8] sm:$0xff]
        %v167 = vld [vmem:[%s116 + $0x100] sm:$0xff]
        %v168 = vld [vmem:[%s116 + $0x108] sm:$0xff]
        %v169 = vld [vmem:[%s116 + $0x110] sm:$0xff]
        %v170 = vld [vmem:[%s116 + $0x118] sm:$0xff]
        %v171 = vld [vmem:[%s116 + $0x120] sm:$0xff]
        %v172 = vld [vmem:[%s116 + $0x128] sm:$0xff]
        %v173 = vld [vmem:[%s116 + $0x130] sm:$0xff]
        %v174 = vld [vmem:[%s116 + $0x138] sm:$0xff]
        %v175 = vld [vmem:[%s116 + $0x140] sm:$0xff]
        %v176 = vld [vmem:[%s116 + $0x148] sm:$0xff]
        %v177 = vld [vmem:[%s116 + $0x150] sm:$0xff]
        %v178 = vld [vmem:[%s116 + $0x158] sm:$0xff]
        %v179 = vld [vmem:[%s116 + $0x160] sm:$0xff]
        %v180 = vld [vmem:[%s116 + $0x168] sm:$0xff]
        %v181 = vld [vmem:[%s116 + $0x170] sm:$0xff]
        %v182 = vld [vmem:[%s116 + $0x178] sm:$0xff]
        %v183 = vld [vmem:[%s116 + $0x180] sm:$0xff]
        %v184 = vld [vmem:[%s116 + $0x188] sm:$0xff]
        %v185 = vld [vmem:[%s116 + $0x190] sm:$0xff]
        %v186 = vld [vmem:[%s116 + $0x198] sm:$0xff]
        %v187 = vld [vmem:[%s116 + $0x1a0] sm:$0xff]
        %v188 = vld [vmem:[%s116 + $0x1a8] sm:$0xff]
        %v189 = vld [vmem:[%s116 + $0x1b0] sm:$0xff]
        %v190 = vld [vmem:[%s116 + $0x1b8] sm:$0xff]
        %v191 = vld [vmem:[%s116 + $0x1c0] sm:$0xff]
        %v192 = vld [vmem:[%s116 + $0x1c8] sm:$0xff]
        %v193 = vld [vmem:[%s116 + $0x1d0] sm:$0xff]
        %v194 = vld [vmem:[%s116 + $0x1d8] sm:$0xff]
        %v195 = vld [vmem:[%s116 + $0x1e0] sm:$0xff]
        %v196 = vld [vmem:[%s116 + $0x1e8] sm:$0xff]
        %v197 = vld [vmem:[%s116 + $0x1f0] sm:$0xff]
        %v198 = vld [vmem:[%s116 + $0x1f8] sm:$0xff]
        %vm199 = vcmask 130048
        %200 = vst.msk [vmem:[%s134] sm:$0xff] %vm199, %v135
        %201 = vst.msk [vmem:[%s134 + $0x8] sm:$0xff] %vm199, %v136
        %202 = vst.msk [vmem:[%s134 + $0x10] sm:$0xff] %vm199, %v137
        %203 = vst.msk [vmem:[%s134 + $0x18] sm:$0xff] %vm199, %v138
        %204 = vst.msk [vmem:[%s134 + $0x20] sm:$0xff] %vm199, %v139
        %205 = vst.msk [vmem:[%s134 + $0x28] sm:$0xff] %vm199, %v140
        %206 = vst.msk [vmem:[%s134 + $0x30] sm:$0xff] %vm199, %v141
        %207 = vst.msk [vmem:[%s134 + $0x38] sm:$0xff] %vm199, %v142
        %208 = vst.msk [vmem:[%s134 + $0x40] sm:$0xff] %vm199, %v143
        %209 = vst.msk [vmem:[%s134 + $0x48] sm:$0xff] %vm199, %v144
        %210 = vst.msk [vmem:[%s134 + $0x50] sm:$0xff] %vm199, %v145
        %211 = vst.msk [vmem:[%s134 + $0x58] sm:$0xff] %vm199, %v146
        %212 = vst.msk [vmem:[%s134 + $0x60] sm:$0xff] %vm199, %v147
        %213 = vst.msk [vmem:[%s134 + $0x68] sm:$0xff] %vm199, %v148
        %214 = vst.msk [vmem:[%s134 + $0x70] sm:$0xff] %vm199, %v149
        %215 = vst.msk [vmem:[%s134 + $0x78] sm:$0xff] %vm199, %v150
        %216 = vst.msk [vmem:[%s134 + $0x80] sm:$0xff] %vm199, %v151
        %217 = vst.msk [vmem:[%s134 + $0x88] sm:$0xff] %vm199, %v152
        %218 = vst.msk [vmem:[%s134 + $0x90] sm:$0xff] %vm199, %v153
        %219 = vst.msk [vmem:[%s134 + $0x98] sm:$0xff] %vm199, %v154
        %220 = vst.msk [vmem:[%s134 + $0xa0] sm:$0xff] %vm199, %v155
        %221 = vst.msk [vmem:[%s134 + $0xa8] sm:$0xff] %vm199, %v156
        %222 = vst.msk [vmem:[%s134 + $0xb0] sm:$0xff] %vm199, %v157
        %223 = vst.msk [vmem:[%s134 + $0xb8] sm:$0xff] %vm199, %v158
        %224 = vst.msk [vmem:[%s134 + $0xc0] sm:$0xff] %vm199, %v159
        %225 = vst.msk [vmem:[%s134 + $0xc8] sm:$0xff] %vm199, %v160
        %226 = vst.msk [vmem:[%s134 + $0xd0] sm:$0xff] %vm199, %v161
        %227 = vst.msk [vmem:[%s134 + $0xd8] sm:$0xff] %vm199, %v162
        %228 = vst.msk [vmem:[%s134 + $0xe0] sm:$0xff] %vm199, %v163
        %229 = vst.msk [vmem:[%s134 + $0xe8] sm:$0xff] %vm199, %v164
        %230 = vst.msk [vmem:[%s134 + $0xf0] sm:$0xff] %vm199, %v165
        %231 = vst.msk [vmem:[%s134 + $0xf8] sm:$0xff] %vm199, %v166
        %232 = vst.msk [vmem:[%s134 + $0x100] sm:$0xff] %vm199, %v167
        %233 = vst.msk [vmem:[%s134 + $0x108] sm:$0xff] %vm199, %v168
        %234 = vst.msk [vmem:[%s134 + $0x110] sm:$0xff] %vm199, %v169
        %235 = vst.msk [vmem:[%s134 + $0x118] sm:$0xff] %vm199, %v170
        %236 = vst.msk [vmem:[%s134 + $0x120] sm:$0xff] %vm199, %v171
        %237 = vst.msk [vmem:[%s134 + $0x128] sm:$0xff] %vm199, %v172
        %238 = vst.msk [vmem:[%s134 + $0x130] sm:$0xff] %vm199, %v173
        %239 = vst.msk [vmem:[%s134 + $0x138] sm:$0xff] %vm199, %v174
        %240 = vst.msk [vmem:[%s134 + $0x140] sm:$0xff] %vm199, %v175
        %241 = vst.msk [vmem:[%s134 + $0x148] sm:$0xff] %vm199, %v176
        %242 = vst.msk [vmem:[%s134 + $0x150] sm:$0xff] %vm199, %v177
        %243 = vst.msk [vmem:[%s134 + $0x158] sm:$0xff] %vm199, %v178
        %244 = vst.msk [vmem:[%s134 + $0x160] sm:$0xff] %vm199, %v179
        %245 = vst.msk [vmem:[%s134 + $0x168] sm:$0xff] %vm199, %v180
        %246 = vst.msk [vmem:[%s134 + $0x170] sm:$0xff] %vm199, %v181
        %247 = vst.msk [vmem:[%s134 + $0x178] sm:$0xff] %vm199, %v182
        %248 = vst.msk [vmem:[%s134 + $0x180] sm:$0xff] %vm199, %v183
        %249 = vst.msk [vmem:[%s134 + $0x188] sm:$0xff] %vm199, %v184
        %250 = vst.msk [vmem:[%s134 + $0x190] sm:$0xff] %vm199, %v185
        %251 = vst.msk [vmem:[%s134 + $0x198] sm:$0xff] %vm199, %v186
        %252 = vst.msk [vmem:[%s134 + $0x1a0] sm:$0xff] %vm199, %v187
        %253 = vst.msk [vmem:[%s134 + $0x1a8] sm:$0xff] %vm199, %v188
        %254 = vst.msk [vmem:[%s134 + $0x1b0] sm:$0xff] %vm199, %v189
        %255 = vst.msk [vmem:[%s134 + $0x1b8] sm:$0xff] %vm199, %v190
        %256 = vst.msk [vmem:[%s134 + $0x1c0] sm:$0xff] %vm199, %v191
        %257 = vst.msk [vmem:[%s134 + $0x1c8] sm:$0xff] %vm199, %v192
        %258 = vst.msk [vmem:[%s134 + $0x1d0] sm:$0xff] %vm199, %v193
        %259 = vst.msk [vmem:[%s134 + $0x1d8] sm:$0xff] %vm199, %v194
        %260 = vst.msk [vmem:[%s134 + $0x1e0] sm:$0xff] %vm199, %v195
        %261 = vst.msk [vmem:[%s134 + $0x1e8] sm:$0xff] %vm199, %v196
        %262 = vst.msk [vmem:[%s134 + $0x1f0] sm:$0xff] %vm199, %v197
        %263 = vst.msk [vmem:[%s134 + $0x1f8] sm:$0xff] %vm199, %v198
        %s264 = sand.u32 %s52, 1
        %s265 = scalar_lea.sflag [#allocation4], %s264
        %s266 = sand.u32 %s52, 1
        %s267 = smul.addr %s266, 512
        %s268 = scalar_lea.vmem [#allocation5], %s267
        // Predicated region
        $region29: #{tpu_custom_call.1} parent=23 // pred_check
          %p269 = pneg %p62
        $region30: #{tpu_custom_call.1} parent=23 // pred_check_branch
          %271 = sbr.rel (%p269) target = $region32
        $region31: #{tpu_custom_call.1} parent=23 // pred_region
          %s273 = ssub.s32 8192, 8192
          %274 = vsyncadd %s265, %s273
          %s275 = smul.addr %s18, 64
          %s276 = smul.addr %s275, 128
          %s277 = scalar_lea.hbm %s1, %s276
          %s278 = sshll.u32 %s268, 4
          %s279 = int_to_ptr.vmem [resolvable:$true] %s278
          %284 = dma.vmem_to_hbm [thread:$0]  %s279, 8192, %s277, %s265, 128, 128, 8
        $region32: #{tpu_custom_call.1} parent=23 // pred_fallthru
          _
      $region24: #{tpu_custom_call.1} parent=5 // pred_fallthru
        _
      %p285 = scmp.le.s32.totalorder 2, %s13
      // Predicated region
      $region33: #{tpu_custom_call.1} parent=5 // pred_check
        %p286 = pneg %p285
      $region34: #{tpu_custom_call.1} parent=5 // pred_check_branch
        %288 = sbr.rel (%p286) target = $region36
      $region35: #{tpu_custom_call.1} parent=5 // pred_region
        %s289 = ssub.s32 %s13, 2
        // Predicated region
        $region37: #{tpu_custom_call.1} parent=35 // pred_check
          %p290 = pneg %p68
        $region38: #{tpu_custom_call.1} parent=35 // pred_check_branch
          %292 = sbr.rel (%p290) target = $region40
        $region39: #{tpu_custom_call.1} parent=35 // pred_region
          %s293 = sand.u32 %s53, 1
          %s294 = scalar_lea.sflag [#allocation4], %s293
          %s295 = sand.u32 %s53, 1
          %s296 = smul.addr %s295, 512
          %s297 = scalar_lea.vmem [#allocation5], %s296
          %298 = dma.done %s294, 8192
        $region40: #{tpu_custom_call.1} parent=35 // pred_fallthru
          _
      $region36: #{tpu_custom_call.1} parent=5 // pred_fallthru
        _
    $region6: #{tpu_custom_call.1} parent=1 // loop_footer
      %s17 = sadd.s32 1, %s13
    $region7: #{tpu_custom_call.1} parent=1 // loop_footer_branch
      %12 = sbr.rel target = $region3
    $region8: #{tpu_custom_call.1} parent=1 // loop_exit
      _
    %299 = vsyncpa [#allocation3], 1
    %s300 = scalar_lea.sflag [#allocation3], 1
    %301 = vsyncpa %s300, 1
    %302 = vsyncpa [#allocation4], 1
    %s303 = scalar_lea.sflag [#allocation4], 1
    %304 = vsyncpa %s303, 1

</llo_original>
